<compile_context>
chip_gen: v7x
topology: tpu7x:2x2x1
jax: 0.10.0
libtpu: 0.0.40
codegen_flags: <defaults>
</compile_context>

<pallas_src>
import functools

import jax
import jax.numpy as jnp
from jax.experimental import pallas as pl
from jax.experimental.pallas import tpu as pltpu


# --------------------------------------------------------------------------
# Kernel 1: fused QKV projection, head-major output layout.
# --------------------------------------------------------------------------
def qkv_proj_kernel(x_ref, wqkv_ref, q_ref, k_ref, v_ref, *, num_heads, scale):
    """x_ref: [tm, E] bf16; wqkv_ref: [E, 3E] bf16; outputs: [H, tm, hs] bf16."""
    tm, E = x_ref.shape
    H = num_heads
    hs = E // H

    qkv = jnp.dot(x_ref[...], wqkv_ref[...],
                  preferred_element_type=jnp.float32)          # [tm, 3E] f32

    # Fold the softmax scale into q once (E muls/row instead of S muls/row).
    q = (qkv[:, :E] * scale).astype(jnp.bfloat16)
    k = qkv[:, E:2 * E].astype(jnp.bfloat16)
    v = qkv[:, 2 * E:].astype(jnp.bfloat16)

    # Head split + transpose done once here, amortized over all KV-tile reuse.
    q_ref[...] = pltpu.einshape("shd->hsd", q.reshape(tm, H, hs))
    k_ref[...] = pltpu.einshape("shd->hsd", k.reshape(tm, H, hs))
    v_ref[...] = pltpu.einshape("shd->hsd", v.reshape(tm, H, hs))


# --------------------------------------------------------------------------
# Kernel 2: flash-style attention (online softmax) + fused output projection.
# --------------------------------------------------------------------------
def flash_attn_kernel(bias_ref, q_ref, k_ref, v_ref, wp_ref, bp_ref, o_ref,
                      m_sc, l_sc, acc_sc, *, exp_dtype):
    """Grid = (B, S//tq, S//tk); KV axis innermost ("arbitrary").

    bias_ref: [1, tk]      f32   additive key bias (-1e30 where masked)
    q_ref:    [H, tq, hs]  bf16  (pre-scaled)
    k_ref:    [H, tk, hs]  bf16
    v_ref:    [H, tk, hs]  bf16
    wp_ref:   [E, E]       bf16  output projection (transposed [in, out])
    bp_ref:   [1, E]       f32
    o_ref:    [tq, E]      out dtype
    scratch:  m_sc/l_sc [H, tq, 1] f32, acc_sc [H, tq, hs] f32
    """
    ki = pl.program_id(2)

    @pl.when(ki == 0)
    def _init():
        m_sc[...] = jnp.full_like(m_sc, -jnp.inf)
        l_sc[...] = jnp.zeros_like(l_sc)
        acc_sc[...] = jnp.zeros_like(acc_sc)

    # Attention logits for all heads on this (q-tile, kv-tile): [H, tq, tk].
    s = jnp.einsum("hqd,hkd->hqk", q_ref[...], k_ref[...],
                   preferred_element_type=jnp.float32)
    s = s + bias_ref[...][None, :, :]                          # key mask bias

    m_prev = m_sc[...]
    m_new = jnp.maximum(m_prev, jnp.max(s, axis=-1, keepdims=True))
    alpha = jnp.exp(m_prev - m_new)                            # [H, tq, 1] f32

    # exp in bf16 (EUP bf16 path on v6e/v7x); max/sum/accumulation stay f32.
    p = jnp.exp((s - m_new).astype(exp_dtype))                 # [H, tq, tk]

    l_sc[...] = alpha * l_sc[...] + jnp.sum(p.astype(jnp.float32),
                                            axis=-1, keepdims=True)
    acc_sc[...] = alpha * acc_sc[...] + jnp.einsum(
        "hqk,hkd->hqd", p.astype(jnp.bfloat16), v_ref[...],
        preferred_element_type=jnp.float32)
    m_sc[...] = m_new

    @pl.when(ki == pl.num_programs(2) - 1)
    def _finalize():
        tq, E = o_ref.shape
        out = acc_sc[...] * pl.reciprocal(l_sc[...], approx=True)  # [H, tq, hs]
        # Heads -> lane-contiguous [tq, E] once per q-tile, then projection.
        concat = pltpu.einshape("hqd->qhd", out.astype(jnp.bfloat16)).reshape(tq, E)
        y = jnp.dot(concat, wp_ref[...], preferred_element_type=jnp.float32)
        y = y + bp_ref[...]
        o_ref[...] = y.astype(o_ref.dtype)


# --------------------------------------------------------------------------
# Wrapper.
# --------------------------------------------------------------------------
def _pick_tile(dim, preferred, candidates):
    for t in (preferred,) + candidates:
        if t <= dim and dim % t == 0:
            return t
    return dim


def _vmem_limit(est_bytes):
    # Headroom over the estimated footprint; 48 MiB cap is safe on v7x (64 MiB
    # physical VMEM).  On v5e/v6e (128 MiB) this could be raised toward 100 MiB.
    return int(min(48 * 2**20, max(32 * 2**20, 2 * est_bytes)))


def multi_head_attention(x, attn_mask, wq, wk, wv, wp, bp, *, num_heads,
                         q_tile=256, kv_tile=256, out_dtype=None,
                         exp_dtype=jnp.bfloat16):
    """x: [B,S,E]; attn_mask: [B,S] (0 = masked key); weights transposed [in,out]."""
    B, S, E = x.shape
    H = num_heads
    assert E % H == 0, "embed_dim must be divisible by num_heads"
    hs = E // H
    out_dtype = x.dtype if out_dtype is None else out_dtype
    out_itemsize = jnp.dtype(out_dtype).itemsize

    # Tile sizes: 256-aligned preferred (v6e/v7x MXU); q-tile may fall back to
    # any multiple of 8, kv-tile stays 128-aligned (or full S) so the [1, tk]
    # mask block keeps a legal lane width.
    tq = _pick_tile(S, q_tile, (512, 256, 128, 64, 32, 16, 8))
    tk = _pick_tile(S, kv_tile, (512, 256, 128))
    tm = _pick_tile(S, 256, (512, 256, 128, 64, 32, 16, 8))

    # Host-side prep: fused QKV weight, bf16 MXU operands, additive key bias
    # with a finite sentinel (no NaN for fully-masked rows; cheaper in-kernel).
    wqkv = jnp.concatenate([wq, wk, wv], axis=1).astype(jnp.bfloat16)   # [E, 3E]
    x_bf = x.astype(jnp.bfloat16)
    wp_bf = wp.astype(jnp.bfloat16)
    bp_f32 = bp.reshape(1, E).astype(jnp.float32)
    bias = jnp.where(attn_mask.reshape(B, 1, S) == 0, -1e30, 0.0).astype(jnp.float32)

    scale = float(E) ** -0.5     # module scales by embed_dim**-0.5 (keep it!)

    def weight_spec(shape):
        return pl.BlockSpec(shape, lambda *idx: (0,) * len(shape),
                            pipeline_mode=pl.Buffered(buffer_count=1))

    # ---------------- QKV projection ----------------
    qkv_est = (2 * (tm * E * 2 + 3 * H * tm * hs * 2)     # dbl-buffered x + q/k/v
               + E * 3 * E * 2                            # resident wqkv
               + 2 * tm * 3 * E * 4)                      # f32 intermediates
    qkv_shape = jax.ShapeDtypeStruct((B, H, S, hs), jnp.bfloat16)
    q, k, v = pl.pallas_call(
        functools.partial(qkv_proj_kernel, num_heads=H, scale=scale),
        out_shape=(qkv_shape, qkv_shape, qkv_shape),
        grid_spec=pltpu.PrefetchScalarGridSpec(
            num_scalar_prefetch=0,
            grid=(B, S // tm),
            in_specs=[
                pl.BlockSpec((None, tm, E), lambda b, si: (b, si, 0)),
                weight_spec((E, 3 * E)),
            ],
            out_specs=[
                pl.BlockSpec((None, H, tm, hs), lambda b, si: (b, 0, si, 0)),
                pl.BlockSpec((None, H, tm, hs), lambda b, si: (b, 0, si, 0)),
                pl.BlockSpec((None, H, tm, hs), lambda b, si: (b, 0, si, 0)),
            ],
        ),
        compiler_params=pltpu.CompilerParams(
            dimension_semantics=("parallel", "parallel"),
            vmem_limit_bytes=_vmem_limit(qkv_est)),
    )(x_bf, wqkv)

    # ---------------- Flash attention + output projection ----------------
    flash_est = (2 * (H * tq * hs * 2 + 2 * H * tk * hs * 2 + tk * 4
                      + tq * E * out_itemsize)            # dbl-buffered blocks
                 + E * E * 2 + E * 4                      # resident wp + bias
                 + 2 * H * tq * 4 + H * tq * hs * 4       # scratch m/l/acc
                 + 2 * H * tq * tk * 4 + H * tq * tk * 2  # s / p intermediates
                 + 2 * tq * E * 4)                        # projection temp
    out = pl.pallas_call(
        functools.partial(flash_attn_kernel, exp_dtype=exp_dtype),
        out_shape=jax.ShapeDtypeStruct((B, S, E), out_dtype),
        grid_spec=pltpu.PrefetchScalarGridSpec(
            num_scalar_prefetch=0,
            grid=(B, S // tq, S // tk),
            in_specs=[
                pl.BlockSpec((None, 1, tk), lambda b, qi, ki: (b, 0, ki)),      # key bias
                pl.BlockSpec((None, H, tq, hs), lambda b, qi, ki: (b, 0, qi, 0)),  # q
                pl.BlockSpec((None, H, tk, hs), lambda b, qi, ki: (b, 0, ki, 0)),  # k
                pl.BlockSpec((None, H, tk, hs), lambda b, qi, ki: (b, 0, ki, 0)),  # v
                weight_spec((E, E)),                                            # Wproj
                weight_spec((1, E)),                                            # bproj
            ],
            out_specs=pl.BlockSpec((None, tq, E), lambda b, qi, ki: (b, qi, 0)),
            scratch_shapes=[
                pltpu.VMEM((H, tq, 1), jnp.float32),     # running max
                pltpu.VMEM((H, tq, 1), jnp.float32),     # running sum
                pltpu.VMEM((H, tq, hs), jnp.float32),    # output accumulator
            ],
        ),
        compiler_params=pltpu.CompilerParams(
            dimension_semantics=("parallel", "parallel", "arbitrary"),
            vmem_limit_bytes=_vmem_limit(flash_est)),
    )(bias, q, k, v, wp_bf, bp_f32)
    return out


# --------------------------------------------------------------------------
# Plain-JAX f32 reference mirroring the PyTorch forward (dropout = identity).
# --------------------------------------------------------------------------
def reference_mha(x, attn_mask, wq, wk, wv, wp, bp, *, num_heads):
    B, S, E = x.shape
    hs = E // num_heads
    q = x @ wq
    k = x @ wk
    v = x @ wv
    outs = []
    for h in range(num_heads):
        qh = q[..., h * hs:(h + 1) * hs]
        kh = k[..., h * hs:(h + 1) * hs]
        vh = v[..., h * hs:(h + 1) * hs]
        wei = jnp.einsum("bqd,bkd->bqk", qh, kh) * (E ** -0.5)
        wei = jnp.where(attn_mask[:, None, :] == 0, -jnp.inf, wei)
        wei = jax.nn.softmax(wei, axis=-1)
        outs.append(jnp.einsum("bqk,bkd->bqd", wei, vh))
    concat = jnp.concatenate(outs, axis=-1)
    return concat @ wp + bp.reshape(1, E)


def _run_case(key, B, S, E, H, n_masked, **mha_kwargs):
    kx, kq, kk, kv, kp, kb = jax.random.split(key, 6)
    x = jax.random.normal(kx, (B, S, E), dtype=jnp.float32)
    attn_mask = jnp.ones((B, S), dtype=jnp.float32)
    if n_masked > 0:
        attn_mask = attn_mask.at[-1, -n_masked:].set(0.0)
    w_scale = 0.02
    wq = w_scale * jax.random.normal(kq, (E, E), dtype=jnp.float32)
    wk = w_scale * jax.random.normal(kk, (E, E), dtype=jnp.float32)
    wv = w_scale * jax.random.normal(kv, (E, E), dtype=jnp.float32)
    wp = w_scale * jax.random.normal(kp, (E, E), dtype=jnp.float32)
    bp = w_scale * jax.random.normal(kb, (1, E), dtype=jnp.float32)

    out = multi_head_attention(x, attn_mask, wq, wk, wv, wp, bp,
                               num_heads=H, **mha_kwargs)
    out = jax.block_until_ready(out)
    ref = reference_mha(x, attn_mask, wq, wk, wv, wp, bp, num_heads=H)
    assert out.shape == (B, S, E)
    # bf16 MXU operands + bf16 exp + approx reciprocal -> loose tolerance.
    assert jnp.allclose(out.astype(jnp.float32), ref, atol=3e-2, rtol=3e-2), \
        f"mismatch vs reference for shape B={B}, S={S}, E={E}, H={H}"


if __name__ == "__main__":
    key = jax.random.PRNGKey(0)
    k1, k2 = jax.random.split(key)

    # Small sanity shape (single tile per batch element).
    _run_case(k1, B=2, S=8, E=32, H=4, n_masked=2)

    # Moderate shape exercising the multi-tile online-softmax path
    # (grid = (B, 2, 2) with 128x128 attention tiles).
    _run_case(k2, B=1, S=256, E=128, H=4, n_masked=17,
              q_tile=128, kv_tile=128)

    print("KERNEL_OK")
</pallas_src>

<mosaic_0001>
module attributes {stable_mosaic.version = 11 : i64} {
  func.func @qkv_proj_kernel(%arg0: i32, %arg1: i32, %arg2: memref<1x8x32xbf16, #tpu.memory_space<vmem>>, %arg3: memref<32x96xbf16, #tpu.memory_space<vmem>>, %arg4: memref<1x4x8x8xbf16, #tpu.memory_space<vmem>>, %arg5: memref<1x4x8x8xbf16, #tpu.memory_space<vmem>>, %arg6: memref<1x4x8x8xbf16, #tpu.memory_space<vmem>>) attributes {dimension_semantics = [#tpu.dimension_semantics<parallel>, #tpu.dimension_semantics<parallel>], iteration_bounds = array<i64: 2, 1>, scalar_prefetch = 0 : i64, scratch_operands = 0 : i64, tpu.core_type = #tpu.core_type<tc>, window_params = [{transform_indices = @transform_0, window_bounds = array<i64: 1, 8, 32>}, {pipeline_mode = #tpu.pipeline_mode<synchronous>, transform_indices = @transform_1, window_bounds = array<i64: 32, 96>}, {transform_indices = @transform_2, window_bounds = array<i64: 1, 4, 8, 8>}, {transform_indices = @transform_3, window_bounds = array<i64: 1, 4, 8, 8>}, {transform_indices = @transform_4, window_bounds = array<i64: 1, 4, 8, 8>}]} {
    %c0 = arith.constant 0 : index
    %c0_0 = arith.constant 0 : index
    %c0_1 = arith.constant 0 : index
    %0 = vector.load %arg2[%c0, %c0_0, %c0_1] : memref<1x8x32xbf16, #tpu.memory_space<vmem>>, vector<1x8x32xbf16>
    %1 = vector.shape_cast %0 : vector<1x8x32xbf16> to vector<8x32xbf16>
    %c0_2 = arith.constant 0 : index
    %c0_3 = arith.constant 0 : index
    %2 = vector.load %arg3[%c0_2, %c0_3] : memref<32x96xbf16, #tpu.memory_space<vmem>>, vector<32x96xbf16>
    %cst = arith.constant dense<0.000000e+00> : vector<8x96xf32>
    %3 = tpu.matmul %1, %2, %cst {dimension_numbers = #tpu.dot_dimension_numbers<[1], [0], [0], [1], [0, 0, 1, 1], [], []>} : vector<8x32xbf16>, vector<32x96xbf16>, vector<8x96xf32> -> vector<8x96xf32>
    %4 = vector.extract_strided_slice %3 {offsets = [0, 0], sizes = [8, 32], strides = [1, 1]} : vector<8x96xf32> to vector<8x32xf32>
    %cst_4 = arith.constant 0.176776692 : f32
    %5 = vector.broadcast %cst_4 : f32 to vector<8x32xf32>
    %6 = arith.mulf %4, %5 : vector<8x32xf32>
    %7 = arith.truncf %6 : vector<8x32xf32> to vector<8x32xbf16>
    %8 = vector.extract_strided_slice %3 {offsets = [0, 32], sizes = [8, 32], strides = [1, 1]} : vector<8x96xf32> to vector<8x32xf32>
    %9 = arith.truncf %8 : vector<8x32xf32> to vector<8x32xbf16>
    %10 = vector.extract_strided_slice %3 {offsets = [0, 64], sizes = [8, 32], strides = [1, 1]} : vector<8x96xf32> to vector<8x32xf32>
    %11 = arith.truncf %10 : vector<8x32xf32> to vector<8x32xbf16>
    %12 = vector.shape_cast %7 : vector<8x32xbf16> to vector<8x4x8xbf16>
    %13 = tpu.transpose %12, [1, 0, 2] : vector<8x4x8xbf16> -> vector<4x8x8xbf16>
    %c0_5 = arith.constant 0 : index
    %c0_6 = arith.constant 0 : index
    %c0_7 = arith.constant 0 : index
    %c0_8 = arith.constant 0 : index
    %14 = vector.load %arg4[%c0_5, %c0_6, %c0_7, %c0_8] : memref<1x4x8x8xbf16, #tpu.memory_space<vmem>>, vector<1x4x8x8xbf16>
    %15 = vector.shape_cast %14 : vector<1x4x8x8xbf16> to vector<4x8x8xbf16>
    %16 = vector.shape_cast %13 : vector<4x8x8xbf16> to vector<1x4x8x8xbf16>
    tpu.vector_store %arg4[%c0_5, %c0_6, %c0_7, %c0_8], %16 {strides = array<i32>} : memref<1x4x8x8xbf16, #tpu.memory_space<vmem>>, vector<1x4x8x8xbf16>,
    %17 = vector.shape_cast %9 : vector<8x32xbf16> to vector<8x4x8xbf16>
    %18 = tpu.transpose %17, [1, 0, 2] : vector<8x4x8xbf16> -> vector<4x8x8xbf16>
    %c0_9 = arith.constant 0 : index
    %c0_10 = arith.constant 0 : index
    %c0_11 = arith.constant 0 : index
    %c0_12 = arith.constant 0 : index
    %19 = vector.load %arg5[%c0_9, %c0_10, %c0_11, %c0_12] : memref<1x4x8x8xbf16, #tpu.memory_space<vmem>>, vector<1x4x8x8xbf16>
    %20 = vector.shape_cast %19 : vector<1x4x8x8xbf16> to vector<4x8x8xbf16>
    %21 = vector.shape_cast %18 : vector<4x8x8xbf16> to vector<1x4x8x8xbf16>
    tpu.vector_store %arg5[%c0_9, %c0_10, %c0_11, %c0_12], %21 {strides = array<i32>} : memref<1x4x8x8xbf16, #tpu.memory_space<vmem>>, vector<1x4x8x8xbf16>,
    %22 = vector.shape_cast %11 : vector<8x32xbf16> to vector<8x4x8xbf16>
    %23 = tpu.transpose %22, [1, 0, 2] : vector<8x4x8xbf16> -> vector<4x8x8xbf16>
    %c0_13 = arith.constant 0 : index
    %c0_14 = arith.constant 0 : index
    %c0_15 = arith.constant 0 : index
    %c0_16 = arith.constant 0 : index
    %24 = vector.load %arg6[%c0_13, %c0_14, %c0_15, %c0_16] : memref<1x4x8x8xbf16, #tpu.memory_space<vmem>>, vector<1x4x8x8xbf16>
    %25 = vector.shape_cast %24 : vector<1x4x8x8xbf16> to vector<4x8x8xbf16>
    %26 = vector.shape_cast %23 : vector<4x8x8xbf16> to vector<1x4x8x8xbf16>
    tpu.vector_store %arg6[%c0_13, %c0_14, %c0_15, %c0_16], %26 {strides = array<i32>} : memref<1x4x8x8xbf16, #tpu.memory_space<vmem>>, vector<1x4x8x8xbf16>,
    return
  }
  func.func @transform_0(%arg0: i32, %arg1: i32) -> (i32, i32, i32) {
    %c0_i32 = arith.constant 0 : i32
    %c0_i32_0 = arith.constant 0 : i32
    return %arg0, %arg1, %c0_i32 : i32, i32, i32
  }
  func.func @transform_1(%arg0: i32, %arg1: i32) -> (i32, i32) {
    %c0_i32 = arith.constant 0 : i32
    %c0_i32_0 = arith.constant 0 : i32
    %c0_i32_1 = arith.constant 0 : i32
    return %c0_i32, %c0_i32_0 : i32, i32
  }
  func.func @transform_2(%arg0: i32, %arg1: i32) -> (i32, i32, i32, i32) {
    %c0_i32 = arith.constant 0 : i32
    %c0_i32_0 = arith.constant 0 : i32
    %c0_i32_1 = arith.constant 0 : i32
    return %arg0, %c0_i32, %arg1, %c0_i32_0 : i32, i32, i32, i32
  }
  func.func @transform_3(%arg0: i32, %arg1: i32) -> (i32, i32, i32, i32) {
    %c0_i32 = arith.constant 0 : i32
    %c0_i32_0 = arith.constant 0 : i32
    %c0_i32_1 = arith.constant 0 : i32
    return %arg0, %c0_i32, %arg1, %c0_i32_0 : i32, i32, i32, i32
  }
  func.func @transform_4(%arg0: i32, %arg1: i32) -> (i32, i32, i32, i32) {
    %c0_i32 = arith.constant 0 : i32
    %c0_i32_0 = arith.constant 0 : i32
    %c0_i32_1 = arith.constant 0 : i32
    return %arg0, %c0_i32, %arg1, %c0_i32_0 : i32, i32, i32, i32
  }
}

</mosaic_0001>

<llo_original>
// kernel: tpu_custom_call.1
$region0: #{tpu_custom_call.1}
  #allocation0 [shape = 'u32[]', space=smem, size = 0x4, offset = 0x4, fixed_abs, tag = 'smem constant byte address 0x4 - core index']
  #allocation1 [shape = 'u32[144,128]{1,0:T(1,128)}', space=vmem, size = 0x12000, scoped, tag = 'internal scratch']
  %s0 = inlined_call_operand.hbm [shape: bf16[2,8,32], index: 0, kind: input, shape index: {}]
  %s1 = inlined_call_operand.hbm [shape: bf16[32,96], index: 1, kind: input, shape index: {}]
  %s2 = inlined_call_operand.hbm [shape: bf16[2,4,8,8], index: 2, kind: output, shape index: {0}]
  %s3 = inlined_call_operand.hbm [shape: bf16[2,4,8,8], index: 3, kind: output, shape index: {1}]
  %s4 = inlined_call_operand.hbm [shape: bf16[2,4,8,8], index: 4, kind: output, shape index: {2}]
  %5 = xla_tuple %s2, %s3, %s4
  %s6 = sld [smem:[#allocation0]]
  $region65: #{tpu_custom_call.1} parent=0
    _
  %s8 = ssub.s32 1, %s6
  %s9 = scalar_select 0, %s8, %s6
  $region1: #{tpu_custom_call.1} parent=0
    #allocation2 [shape = 'u8[4096]{0}', space=vmem, size = 0x1000, scoped, tag = 'input window, operand 0']
    #allocation3 [shape = 's32[2]{0}', space=sflag, size = 0x8, scoped, tag = 'scoped memory for tpu_custom_call.1']
    #allocation4 [shape = 's32[2]{0}', space=sflag, size = 0x8, scoped, tag = 'scoped memory for tpu_custom_call.1']
    #allocation5 [shape = 'u8[8192]{0}', space=vmem, size = 0x2000, scoped, tag = 'input window, operand 1, single buffered']
    #allocation6 [shape = 's32[1]{0}', space=sflag, size = 0x4, scoped, tag = 'scoped memory for tpu_custom_call.1']
    #allocation7 [shape = 'u8[16384]{0}', space=vmem, size = 0x4000, scoped, tag = 'output window, operand 0']
    #allocation8 [shape = 'u8[16384]{0}', space=vmem, size = 0x4000, scoped, tag = 'output window, operand 1']
    #allocation9 [shape = 's32[2]{0}', space=sflag, size = 0x8, scoped, tag = 'scoped memory for tpu_custom_call.1']
    #allocation10 [shape = 'u8[16384]{0}', space=vmem, size = 0x4000, scoped, tag = 'output window, operand 2']
    %10 = vsyncpa [#allocation3], 0
    %s11 = scalar_lea.sflag [#allocation3], 1
    %12 = vsyncpa %s11, 0
    %13 = vsyncpa [#allocation6], 0
    %14 = vsyncpa [#allocation4], 0
    %s15 = scalar_lea.sflag [#allocation4], 1
    %16 = vsyncpa %s15, 0
    %17 = vsyncpa [#allocation9], 0
    %s18 = scalar_lea.sflag [#allocation9], 1
    %19 = vsyncpa %s18, 0
    loop: start=0, step=1, limit=4
    $region2: #{tpu_custom_call.1} parent=1 // loop_pre_header
      _
    $region3: #{tpu_custom_call.1} parent=1 // loop_header
      %s21 = sphi 0, %s25
      %p22 = scmp.ge.s32.totalorder %s21, 4
      %s28 = sphi 0, %s40
      %s29 = sphi 0, %s36
      %s30 = sphi 0, %s28
      %s31 = sphi 0, %s29
      %s32 = sphi 0, %s30
      %s33 = sphi 0, %s31
      %s45 = sphi 0, %s47
      %s48 = sphi 0, %s45
      %s49 = sphi 0, %s48
      %s65 = sphi 0, %s49
      %s69 = sphi 0, %s69
      %s71 = sphi 0, %s69
      %s72 = sphi 0, %s71
      %s86 = sphi 0, %s72
      %s94 = sphi 0, %s96
      %s97 = sphi 0, %s94
      %s98 = sphi 0, %s97
      %s114 = sphi 0, %s98
      %s122 = sphi 0, %s124
      %s125 = sphi 0, %s122
      %s126 = sphi 0, %s125
      %s142 = sphi 0, %s126
      %s150 = sphi 0, %s152
      %s153 = sphi 0, %s150
      %s154 = sphi 0, %s153
      %s170 = sphi 0, %s154
    $region4: #{tpu_custom_call.1} parent=1 // loop_header_branch
      %24 = sbr.rel (%p22) target = $region8
    $region5: #{tpu_custom_call.1} parent=1 // loop_body
      %s26 = ssub.s32 %s21, 1
      %s27 = ssub.s32 %s21, 2
      %s34 = sadd.s32 1, %s29
      %p35 = scmp.ge.s32.totalorder %s34, 1
      %s36 = scalar_select %p35, 0, %s34
      %s37 = sadd.s32 1, %s28
      %s38 = scalar_select %p35, %s37, %s28
      %p39 = scmp.ge.s32.totalorder %s38, 2
      %s40 = scalar_select %p39, 0, %s38
      %s41 = ssub.s32 %s28, %s40
      %s42 = ssub.s32 %s29, %s36
      %s43 = sor.u32 %s41, %s42
      %p44 = scmp.eq.s32.totalorder %s43, 0
      %s46 = sadd.s32 %s45, 1
      %s47 = scalar_select %p44, %s45, %s46
      %p50 = pneg %p44
      %p51 = scmp.eq.s32.totalorder %s21, 1
      %p52 = por %p50, %p51
      %p53 = scmp.ne.s32.totalorder %s45, %s48
      %p54 = scmp.eq.s32.totalorder %s21, 0
      %p55 = por %p53, %p54
      %p56 = scmp.ne.s32.totalorder %s45, %s48
      %p57 = scmp.eq.s32.totalorder %s26, 1
      %p58 = por %p56, %p57
      %p59 = scmp.ne.s32.totalorder %s48, %s49
      %p60 = scmp.eq.s32.totalorder %s26, 0
      %p61 = por %p59, %p60
      %p62 = scmp.ne.s32.totalorder %s48, %s49
      %p63 = scmp.eq.s32.totalorder %s27, 1
      %p64 = por %p62, %p63
      %p66 = scmp.ne.s32.totalorder %s49, %s65
      %p67 = scmp.eq.s32.totalorder %s27, 0
      %p68 = por %p66, %p67
      %s70 = sadd.s32 %s69, 1
      %p73 = scmp.eq.s32.totalorder %s21, 1
      %p74 = scmp.ne.s32.totalorder %s69, %s71
      %p75 = scmp.eq.s32.totalorder %s21, 0
      %p76 = por %p74, %p75
      %p77 = scmp.ne.s32.totalorder %s69, %s71
      %p78 = scmp.eq.s32.totalorder %s26, 1
      %p79 = por %p77, %p78
      %p80 = scmp.ne.s32.totalorder %s71, %s72
      %p81 = scmp.eq.s32.totalorder %s26, 0
      %p82 = por %p80, %p81
      %p83 = scmp.ne.s32.totalorder %s71, %s72
      %p84 = scmp.eq.s32.totalorder %s27, 1
      %p85 = por %p83, %p84
      %p87 = scmp.ne.s32.totalorder %s72, %s86
      %p88 = scmp.eq.s32.totalorder %s27, 0
      %p89 = por %p87, %p88
      %s90 = ssub.s32 %s28, %s40
      %s91 = ssub.s32 %s29, %s36
      %s92 = sor.u32 %s90, %s91
      %p93 = scmp.eq.s32.totalorder %s92, 0
      %s95 = sadd.s32 %s94, 1
      %s96 = scalar_select %p93, %s94, %s95
      %p99 = pneg %p93
      %p100 = scmp.eq.s32.totalorder %s21, 1
      %p101 = por %p99, %p100
      %p102 = scmp.ne.s32.totalorder %s94, %s97
      %p103 = scmp.eq.s32.totalorder %s21, 0
      %p104 = por %p102, %p103
      %p105 = scmp.ne.s32.totalorder %s94, %s97
      %p106 = scmp.eq.s32.totalorder %s26, 1
      %p107 = por %p105, %p106
      %p108 = scmp.ne.s32.totalorder %s97, %s98
      %p109 = scmp.eq.s32.totalorder %s26, 0
      %p110 = por %p108, %p109
      %p111 = scmp.ne.s32.totalorder %s97, %s98
      %p112 = scmp.eq.s32.totalorder %s27, 1
      %p113 = por %p111, %p112
      %p115 = scmp.ne.s32.totalorder %s98, %s114
      %p116 = scmp.eq.s32.totalorder %s27, 0
      %p117 = por %p115, %p116
      %s118 = ssub.s32 %s28, %s40
      %s119 = ssub.s32 %s29, %s36
      %s120 = sor.u32 %s118, %s119
      %p121 = scmp.eq.s32.totalorder %s120, 0
      %s123 = sadd.s32 %s122, 1
      %s124 = scalar_select %p121, %s122, %s123
      %p127 = pneg %p121
      %p128 = scmp.eq.s32.totalorder %s21, 1
      %p129 = por %p127, %p128
      %p130 = scmp.ne.s32.totalorder %s122, %s125
      %p131 = scmp.eq.s32.totalorder %s21, 0
      %p132 = por %p130, %p131
      %p133 = scmp.ne.s32.totalorder %s122, %s125
      %p134 = scmp.eq.s32.totalorder %s26, 1
      %p135 = por %p133, %p134
      %p136 = scmp.ne.s32.totalorder %s125, %s126
      %p137 = scmp.eq.s32.totalorder %s26, 0
      %p138 = por %p136, %p137
      %p139 = scmp.ne.s32.totalorder %s125, %s126
      %p140 = scmp.eq.s32.totalorder %s27, 1
      %p141 = por %p139, %p140
      %p143 = scmp.ne.s32.totalorder %s126, %s142
      %p144 = scmp.eq.s32.totalorder %s27, 0
      %p145 = por %p143, %p144
      %s146 = ssub.s32 %s28, %s40
      %s147 = ssub.s32 %s29, %s36
      %s148 = sor.u32 %s146, %s147
      %p149 = scmp.eq.s32.totalorder %s148, 0
      %s151 = sadd.s32 %s150, 1
      %s152 = scalar_select %p149, %s150, %s151
      %p155 = pneg %p149
      %p156 = scmp.eq.s32.totalorder %s21, 1
      %p157 = por %p155, %p156
      %p158 = scmp.ne.s32.totalorder %s150, %s153
      %p159 = scmp.eq.s32.totalorder %s21, 0
      %p160 = por %p158, %p159
      %p161 = scmp.ne.s32.totalorder %s150, %s153
      %p162 = scmp.eq.s32.totalorder %s26, 1
      %p163 = por %p161, %p162
      %p164 = scmp.ne.s32.totalorder %s153, %s154
      %p165 = scmp.eq.s32.totalorder %s26, 0
      %p166 = por %p164, %p165
      %p167 = scmp.ne.s32.totalorder %s153, %s154
      %p168 = scmp.eq.s32.totalorder %s27, 1
      %p169 = por %p167, %p168
      %p171 = scmp.ne.s32.totalorder %s154, %s170
      %p172 = scmp.eq.s32.totalorder %s27, 0
      %p173 = por %p171, %p172
      %p174 = scmp.le.s32.totalorder 1, %s21
      %p175 = scmp.lt.s32.totalorder %s21, 3
      %p176 = pnand %p174, %p175
      %p177 = pneg %p176
      // Predicated region
      $region9: #{tpu_custom_call.1} parent=5 // pred_check
        _
      $region10: #{tpu_custom_call.1} parent=5 // pred_check_branch
        %179 = sbr.rel (%p176) target = $region12
      $region11: #{tpu_custom_call.1} parent=5 // pred_region
        %s180 = ssub.s32 %s21, 1
        // Predicated region
        $region13: #{tpu_custom_call.1} parent=11 // pred_check
          %p181 = pneg %p82
        $region14: #{tpu_custom_call.1} parent=11 // pred_check_branch
          %183 = sbr.rel (%p181) target = $region16
        $region15: #{tpu_custom_call.1} parent=11 // pred_region
          %s185 = ssub.s32 256, 256
          %186 = vsyncadd [#allocation6], %s185
          %s187 = sshll.u32 [#allocation5], 4
          %s188 = int_to_ptr.vmem [resolvable:$true] %s187
          %193 = dma.hbm_to_vmem [thread:$0]  %s1, 256, %s188, [#allocation6], 64, 64, 4
        $region16: #{tpu_custom_call.1} parent=11 // pred_fallthru
          _
      $region12: #{tpu_custom_call.1} parent=5 // pred_fallthru
        _
      %p194 = scmp.lt.s32.totalorder %s21, 2
      // Predicated region
      $region17: #{tpu_custom_call.1} parent=5 // pred_check
        %p195 = pneg %p194
      $region18: #{tpu_custom_call.1} parent=5 // pred_check_branch
        %197 = sbr.rel (%p195) target = $region20
      $region19: #{tpu_custom_call.1} parent=5 // pred_region
        // Predicated region
        $region21: #{tpu_custom_call.1} parent=19 // pred_check
          %p198 = pneg %p55
        $region22: #{tpu_custom_call.1} parent=19 // pred_check_branch
          %200 = sbr.rel (%p198) target = $region24
        $region23: #{tpu_custom_call.1} parent=19 // pred_region
          %s201 = sand.u32 %s45, 1
          %s202 = scalar_lea.sflag [#allocation3], %s201
          %s203 = sand.u32 %s45, 1
          %s204 = smul.addr %s203, 4
          %s205 = scalar_lea.vmem [#allocation2], %s204
          %s207 = ssub.s32 64, 64
          %208 = vsyncadd %s202, %s207
          %s209 = sadd.s32 %s29, %s28
          %s210 = smul.addr %s209, 64
          %s211 = scalar_lea.hbm %s0, %s210
          %s213 = sshll.u32 %s205, 4
          %s214 = int_to_ptr.vmem [resolvable:$true] %s213
          %216 = dma.hbm_to_vmem [thread:$0]  %s211, 64, %s214, %s202
        $region24: #{tpu_custom_call.1} parent=19 // pred_fallthru
          _
      $region20: #{tpu_custom_call.1} parent=5 // pred_fallthru
        _
      %p217 = scmp.le.s32.totalorder 1, %s21
      %p218 = scmp.lt.s32.totalorder %s21, 3
      %p219 = pnand %p217, %p218
      %p220 = pneg %p219
      // Predicated region
      $region25: #{tpu_custom_call.1} parent=5 // pred_check
        _
      $region26: #{tpu_custom_call.1} parent=5 // pred_check_branch
        %222 = sbr.rel (%p219) target = $region28
      $region27: #{tpu_custom_call.1} parent=5 // pred_region
        %s223 = ssub.s32 %s21, 1
        %s224 = sand.u32 %s48, 1
        %s225 = scalar_lea.sflag [#allocation3], %s224
        %s226 = sand.u32 %s48, 1
        %s227 = smul.addr %s226, 4
        %s228 = scalar_lea.vmem [#allocation2], %s227
        // Predicated region
        $region29: #{tpu_custom_call.1} parent=27 // pred_check
          %p229 = pneg %p61
        $region30: #{tpu_custom_call.1} parent=27 // pred_check_branch
          %231 = sbr.rel (%p229) target = $region32
        $region31: #{tpu_custom_call.1} parent=27 // pred_region
          %232 = dma.done %s225, 64
        $region32: #{tpu_custom_call.1} parent=27 // pred_fallthru
          _
        // Predicated region
        $region33: #{tpu_custom_call.1} parent=27 // pred_check
          %p233 = pneg %p82
        $region34: #{tpu_custom_call.1} parent=27 // pred_check_branch
          %235 = sbr.rel (%p233) target = $region36
        $region35: #{tpu_custom_call.1} parent=27 // pred_region
          %236 = dma.done [#allocation6], 256
        $region36: #{tpu_custom_call.1} parent=27 // pred_fallthru
          _
        %s237 = sand.u32 %s48, 1
        %s238 = scalar_lea.sflag [#allocation3], %s237
        %s239 = sand.u32 %s48, 1
        %s240 = smul.addr %s239, 4
        %s241 = scalar_lea.vmem [#allocation2], %s240
        %p242 = pneg %p61
        %p243 = pneg %p58
        %p244 = pneg %p82
        %p245 = pneg %p79
        %p246 = pneg %p110
        %p247 = pneg %p107
        %s248 = sand.u32 %s97, 1
        %s249 = scalar_lea.sflag [#allocation4], %s248
        %s250 = sand.u32 %s97, 1
        %s251 = smul.addr %s250, 16
        %s252 = scalar_lea.vmem [#allocation7], %s251
        %p253 = pneg %p138
        %p254 = pneg %p135
        %s255 = sand.u32 %s26, 1
        %s256 = scalar_lea.sflag [#allocation9], %s255
        %s257 = sand.u32 %s125, 1
        %s258 = smul.addr %s257, 16
        %s259 = scalar_lea.vmem [#allocation8], %s258
        %p260 = pneg %p166
        %p261 = pneg %p163
        %s262 = sand.u32 %s26, 1
        %s263 = scalar_lea.sflag [#allocation9], %s262
        %s264 = sand.u32 %s153, 1
        %s265 = smul.addr %s264, 16
        %s266 = scalar_lea.vmem [#allocation10], %s265
        %v268 = vld [vmem:[%s228] sm:$0xf]
        %v269 = vld [vmem:[#allocation5] sm:$0xf]
        %v270 = vld [vmem:[#allocation5 + $0x4] sm:$0xf]
        %v271 = vld [vmem:[#allocation5 + $0x8] sm:$0xf]
        %v272 = vld [vmem:[#allocation5 + $0xc] sm:$0xf]
        %v277 = vunpack.c.l.b16 %v269
        %v278 = vunpack.c.l.b16 %v270
        %v279 = vunpack.c.l.b16 %v271
        %v280 = vunpack.c.l.b16 %v272
        %v281 = vpack.c.b16 %v278, %v277
        %v282 = vpack.c.b16 %v280, %v279
        %vm285 = vcmask 261120
        %v287 = vsel %vm285, %v268, 0
        %289 = vmatprep.subr.bf16.mxu0 0
        %290 = vmatpush1.bf16.msra.mxu0 %v281
        %291 = vmatprep.subr.bf16.mxu0 0
        %292 = vmatpush1.bf16.msra.mxu0 %v282
        %293 = vmatprep.subr.bf16.mxu0 0
        %294 = vmatpush1.bf16.msra.mxu0 0
        %295 = vmatprep.subr.bf16.mxu0 0
        %296 = vmatpush1.bf16.msra.mxu0 0
        %297 = vmatprep.subr.bf16.mxu0 0
        %298 = vmatpush1.bf16.msra.mxu0 0
        %299 = vmatprep.subr.bf16.mxu0 0
        %300 = vmatpush1.bf16.msra.mxu0 0
        %301 = vmatprep.subr.bf16.mxu0 0
        %302 = vmatpush1.bf16.msra.mxu0 0
        %303 = vmatprep.subr.bf16.mxu0 0
        %304 = vmatpush1.bf16.msra.mxu0 0
        %305 = vmatprep.subr.bf16.mxu0 0
        %306 = vmatpush1.bf16.msra.mxu0 0
        %307 = vmatprep.subr.bf16.mxu0 0
        %308 = vmatpush1.bf16.msra.mxu0 0
        %309 = vmatprep.subr.bf16.mxu0 0
        %310 = vmatpush1.bf16.msra.mxu0 0
        %311 = vmatprep.subr.bf16.mxu0 0
        %312 = vmatpush1.bf16.msra.mxu0 0
        %313 = vmatprep.subr.bf16.mxu0 0
        %314 = vmatpush1.bf16.msra.mxu0 0
        %315 = vmatprep.subr.bf16.mxu0 0
        %316 = vmatpush1.bf16.msra.mxu0 0
        %317 = vmatprep.subr.bf16.mxu0 0
        %318 = vmatpush1.bf16.msra.mxu0 0
        %319 = vmatprep.subr.bf16.mxu0 0
        %320 = vmatpush1.bf16.msra.mxu0 0
        %321 = vmatprep.mubr.bf16.mxu0 0
        %322 = vmatmul.mubr.bf16.gmra.mrb[0].mxu0 %v287
        %v323 = vpop.f32.mrb[0].mxu0
        %v324 = vadd.f32 0.0, %v323
        %v325 = vpop.f32.mrb[0].mxu0
        %v326 = vpop.f32.mrb[0].mxu0
        %v327 = vpop.f32.mrb[0].mxu0
        %328 = vdwg.mxu0
        %v329 = vmul.f32 %v324, 0.17677669
        %v330 = vpack.c.bf16 %v329, %v329
        %v331 = vpack.c.bf16 %v324, %v324
        %333 = vrot.lane.b32.xlu0 %v330, 120
        %v334 = vpop.permute.xlu0 %333
        %335 = vrot.lane.b32.xlu0 %v330, 112
        %v336 = vpop.permute.xlu0 %335
        %337 = vrot.lane.b32.xlu0 %v330, 104
        %v338 = vpop.permute.xlu0 %337
        %v340 = vunpack.c.l.s4 1983009808
        %v341 = vunpack.c.0.s8 %v340
        %v342 = vlaneseq
        %v343 = vshrl.u32 %v342, 7
        %v344 = vsub.s32 %v341, %v343
        %v345 = vrot.slane %v330, %v344
        %v348 = vunpack.c.l.s4 1983009808
        %v349 = vunpack.c.0.s8 %v348
        %v350 = vlaneseq
        %v351 = vshrl.u32 %v350, 7
        %v352 = vsub.s32 %v349, %v351
        %v353 = vrot.slane %v336, %v352
        %v354 = vcombine.low %v345, %v353
        %v355 = vcombine.high %v345, %v353
        %v357 = vunpack.c.l.s4 1934713408
        %v358 = vunpack.c.0.s8 %v357
        %v359 = vlaneseq
        %v360 = vshrl.u32 %v359, 7
        %v361 = vsub.s32 %v358, %v360
        %v362 = vrot.slane %v354, %v361
        %v364 = vunpack.c.l.s4 1934713408
        %v365 = vunpack.c.0.s8 %v364
        %v366 = vlaneseq
        %v367 = vshrl.u32 %v366, 7
        %v368 = vsub.s32 %v365, %v367
        %v369 = vrot.slane %v355, %v368
        %v370 = vcombine.high %v362, 0
        %v371 = vcombine.high %v369, 0
        %v374 = vunpack.c.l.s4 1983009808
        %v375 = vunpack.c.0.s8 %v374
        %v376 = vlaneseq
        %v377 = vshrl.u32 %v376, 7
        %v378 = vsub.s32 %v375, %v377
        %v379 = vrot.slane %v334, %v378
        %v382 = vunpack.c.l.s4 1983009808
        %v383 = vunpack.c.0.s8 %v382
        %v384 = vlaneseq
        %v385 = vshrl.u32 %v384, 7
        %v386 = vsub.s32 %v383, %v385
        %v387 = vrot.slane %v338, %v386
        %v388 = vcombine.low %v379, %v387
        %v389 = vcombine.high %v379, %v387
        %v391 = vunpack.c.l.s4 1934713408
        %v392 = vunpack.c.0.s8 %v391
        %v393 = vlaneseq
        %v394 = vshrl.u32 %v393, 7
        %v395 = vsub.s32 %v392, %v394
        %v396 = vrot.slane %v388, %v395
        %v398 = vunpack.c.l.s4 1934713408
        %v399 = vunpack.c.0.s8 %v398
        %v400 = vlaneseq
        %v401 = vshrl.u32 %v400, 7
        %v402 = vsub.s32 %v399, %v401
        %v403 = vrot.slane %v389, %v402
        %v404 = vcombine.high %v396, 0
        %v405 = vcombine.high %v403, 0
        %v408 = vpack.i.b16 %v396, %v362
        %v410 = vshrl.u32 %v362, 16
        %v411 = vshrl.u32 %v396, 16
        %v412 = vpack.i.b16 %v411, %v410
        %v416 = vpack.i.b16 %v404, %v370
        %v418 = vshrl.u32 %v370, 16
        %v419 = vshrl.u32 %v404, 16
        %v420 = vpack.i.b16 %v419, %v418
        %v424 = vpack.i.b16 %v403, %v369
        %v426 = vshrl.u32 %v369, 16
        %v427 = vshrl.u32 %v403, 16
        %v428 = vpack.i.b16 %v427, %v426
        %v432 = vpack.i.b16 %v405, %v371
        %v434 = vshrl.u32 %v371, 16
        %v435 = vshrl.u32 %v405, 16
        %v436 = vpack.i.b16 %v435, %v434
        %v438 = vcombine.low %v408, %v424
        %v440 = vunpack.c.l.s4 1983009808
        %v441 = vunpack.c.0.s8 %v440
        %v442 = vlaneseq
        %v443 = vshrl.u32 %v442, 7
        %v444 = vsub.s32 %v441, %v443
        %v445 = vrot.slane %v438, %v444
        %v446 = vcombine.low %v416, %v432
        %v448 = vunpack.c.l.s4 1983009808
        %v449 = vunpack.c.0.s8 %v448
        %v450 = vlaneseq
        %v451 = vshrl.u32 %v450, 7
        %v452 = vsub.s32 %v449, %v451
        %v453 = vrot.slane %v446, %v452
        %v454 = vcombine.low %v445, %v453
        %v456 = vunpack.c.l.s4 1934713408
        %v457 = vunpack.c.0.s8 %v456
        %v458 = vlaneseq
        %v459 = vshrl.u32 %v458, 7
        %v460 = vsub.s32 %v457, %v459
        %v461 = vrot.slane %v454, %v460
        %v462 = vcombine.high %v461, 0
        %v463 = vcombine.low %v412, %v428
        %v465 = vunpack.c.l.s4 1983009808
        %v466 = vunpack.c.0.s8 %v465
        %v467 = vlaneseq
        %v468 = vshrl.u32 %v467, 7
        %v469 = vsub.s32 %v466, %v468
        %v470 = vrot.slane %v463, %v469
        %v471 = vcombine.low %v420, %v436
        %v473 = vunpack.c.l.s4 1983009808
        %v474 = vunpack.c.0.s8 %v473
        %v475 = vlaneseq
        %v476 = vshrl.u32 %v475, 7
        %v477 = vsub.s32 %v474, %v476
        %v478 = vrot.slane %v471, %v477
        %v479 = vcombine.low %v470, %v478
        %v481 = vunpack.c.l.s4 1934713408
        %v482 = vunpack.c.0.s8 %v481
        %v483 = vlaneseq
        %v484 = vshrl.u32 %v483, 7
        %v485 = vsub.s32 %v482, %v484
        %v486 = vrot.slane %v479, %v485
        %v487 = vcombine.high %v486, 0
        %v490 = vpack.i.b16 %v486, %v461
        %v492 = vshrl.u32 %v461, 16
        %v493 = vshrl.u32 %v486, 16
        %v494 = vpack.i.b16 %v493, %v492
        %v498 = vpack.i.b16 %v487, %v462
        %v500 = vshrl.u32 %v462, 16
        %v501 = vshrl.u32 %v487, 16
        %v502 = vpack.i.b16 %v501, %v500
        %vm504 = vcmask 60416
        %505 = vst.msk [vmem:[%s252] sm:$0xf] %vm504, %v490
        %506 = vst.msk [vmem:[%s252 + $0x4] sm:$0xf] %vm504, %v494
        %507 = vst.msk [vmem:[%s252 + $0x8] sm:$0xf] %vm504, %v498
        %508 = vst.msk [vmem:[%s252 + $0xc] sm:$0xf] %vm504, %v502
        %510 = vrot.lane.b32.xlu0 %v331, 120
        %v511 = vpop.permute.xlu0 %510
        %512 = vrot.lane.b32.xlu0 %v331, 112
        %v513 = vpop.permute.xlu0 %512
        %514 = vrot.lane.b32.xlu0 %v331, 104
        %v515 = vpop.permute.xlu0 %514
        %516 = vrot.lane.b32.xlu0 %v331, 96
        %v517 = vpop.permute.xlu0 %516
        %518 = vrot.lane.b32.xlu0 %v511, 96
        %v519 = vpop.permute.xlu0 %518
        %520 = vrot.lane.b32.xlu0 %v513, 96
        %v521 = vpop.permute.xlu0 %520
        %522 = vrot.lane.b32.xlu0 %v515, 96
        %v523 = vpop.permute.xlu0 %522
        %v526 = vunpack.c.l.s4 1983009808
        %v527 = vunpack.c.0.s8 %v526
        %v528 = vlaneseq
        %v529 = vshrl.u32 %v528, 7
        %v530 = vsub.s32 %v527, %v529
        %v531 = vrot.slane %v517, %v530
        %v534 = vunpack.c.l.s4 1983009808
        %v535 = vunpack.c.0.s8 %v534
        %v536 = vlaneseq
        %v537 = vshrl.u32 %v536, 7
        %v538 = vsub.s32 %v535, %v537
        %v539 = vrot.slane %v521, %v538
        %v540 = vcombine.low %v531, %v539
        %v541 = vcombine.high %v531, %v539
        %v543 = vunpack.c.l.s4 1934713408
        %v544 = vunpack.c.0.s8 %v543
        %v545 = vlaneseq
        %v546 = vshrl.u32 %v545, 7
        %v547 = vsub.s32 %v544, %v546
        %v548 = vrot.slane %v540, %v547
        %v550 = vunpack.c.l.s4 1934713408
        %v551 = vunpack.c.0.s8 %v550
        %v552 = vlaneseq
        %v553 = vshrl.u32 %v552, 7
        %v554 = vsub.s32 %v551, %v553
        %v555 = vrot.slane %v541, %v554
        %v556 = vcombine.high %v548, 0
        %v557 = vcombine.high %v555, 0
        %v560 = vunpack.c.l.s4 1983009808
        %v561 = vunpack.c.0.s8 %v560
        %v562 = vlaneseq
        %v563 = vshrl.u32 %v562, 7
        %v564 = vsub.s32 %v561, %v563
        %v565 = vrot.slane %v519, %v564
        %v568 = vunpack.c.l.s4 1983009808
        %v569 = vunpack.c.0.s8 %v568
        %v570 = vlaneseq
        %v571 = vshrl.u32 %v570, 7
        %v572 = vsub.s32 %v569, %v571
        %v573 = vrot.slane %v523, %v572
        %v574 = vcombine.low %v565, %v573
        %v575 = vcombine.high %v565, %v573
        %v577 = vunpack.c.l.s4 1934713408
        %v578 = vunpack.c.0.s8 %v577
        %v579 = vlaneseq
        %v580 = vshrl.u32 %v579, 7
        %v581 = vsub.s32 %v578, %v580
        %v582 = vrot.slane %v574, %v581
        %v584 = vunpack.c.l.s4 1934713408
        %v585 = vunpack.c.0.s8 %v584
        %v586 = vlaneseq
        %v587 = vshrl.u32 %v586, 7
        %v588 = vsub.s32 %v585, %v587
        %v589 = vrot.slane %v575, %v588
        %v590 = vcombine.high %v582, 0
        %v591 = vcombine.high %v589, 0
        %v594 = vpack.i.b16 %v582, %v548
        %v596 = vshrl.u32 %v548, 16
        %v597 = vshrl.u32 %v582, 16
        %v598 = vpack.i.b16 %v597, %v596
        %v602 = vpack.i.b16 %v590, %v556
        %v604 = vshrl.u32 %v556, 16
        %v605 = vshrl.u32 %v590, 16
        %v606 = vpack.i.b16 %v605, %v604
        %v610 = vpack.i.b16 %v589, %v555
        %v612 = vshrl.u32 %v555, 16
        %v613 = vshrl.u32 %v589, 16
        %v614 = vpack.i.b16 %v613, %v612
        %v618 = vpack.i.b16 %v591, %v557
        %v620 = vshrl.u32 %v557, 16
        %v621 = vshrl.u32 %v591, 16
        %v622 = vpack.i.b16 %v621, %v620
        %v624 = vcombine.low %v594, %v610
        %v626 = vunpack.c.l.s4 1983009808
        %v627 = vunpack.c.0.s8 %v626
        %v628 = vlaneseq
        %v629 = vshrl.u32 %v628, 7
        %v630 = vsub.s32 %v627, %v629
        %v631 = vrot.slane %v624, %v630
        %v632 = vcombine.low %v602, %v618
        %v634 = vunpack.c.l.s4 1983009808
        %v635 = vunpack.c.0.s8 %v634
        %v636 = vlaneseq
        %v637 = vshrl.u32 %v636, 7
        %v638 = vsub.s32 %v635, %v637
        %v639 = vrot.slane %v632, %v638
        %v640 = vcombine.low %v631, %v639
        %v642 = vunpack.c.l.s4 1934713408
        %v643 = vunpack.c.0.s8 %v642
        %v644 = vlaneseq
        %v645 = vshrl.u32 %v644, 7
        %v646 = vsub.s32 %v643, %v645
        %v647 = vrot.slane %v640, %v646
        %v648 = vcombine.high %v647, 0
        %v649 = vcombine.low %v598, %v614
        %v651 = vunpack.c.l.s4 1983009808
        %v652 = vunpack.c.0.s8 %v651
        %v653 = vlaneseq
        %v654 = vshrl.u32 %v653, 7
        %v655 = vsub.s32 %v652, %v654
        %v656 = vrot.slane %v649, %v655
        %v657 = vcombine.low %v606, %v622
        %v659 = vunpack.c.l.s4 1983009808
        %v660 = vunpack.c.0.s8 %v659
        %v661 = vlaneseq
        %v662 = vshrl.u32 %v661, 7
        %v663 = vsub.s32 %v660, %v662
        %v664 = vrot.slane %v657, %v663
        %v665 = vcombine.low %v656, %v664
        %v667 = vunpack.c.l.s4 1934713408
        %v668 = vunpack.c.0.s8 %v667
        %v669 = vlaneseq
        %v670 = vshrl.u32 %v669, 7
        %v671 = vsub.s32 %v668, %v670
        %v672 = vrot.slane %v665, %v671
        %v673 = vcombine.high %v672, 0
        %v676 = vpack.i.b16 %v672, %v647
        %v678 = vshrl.u32 %v647, 16
        %v679 = vshrl.u32 %v672, 16
        %v680 = vpack.i.b16 %v679, %v678
        %v684 = vpack.i.b16 %v673, %v648
        %v686 = vshrl.u32 %v648, 16
        %v687 = vshrl.u32 %v673, 16
        %v688 = vpack.i.b16 %v687, %v686
        %690 = vst.msk [vmem:[%s259] sm:$0xf] %vm504, %v676
        %691 = vst.msk [vmem:[%s259 + $0x4] sm:$0xf] %vm504, %v680
        %692 = vst.msk [vmem:[%s259 + $0x8] sm:$0xf] %vm504, %v684
        %693 = vst.msk [vmem:[%s259 + $0xc] sm:$0xf] %vm504, %v688
        %694 = vrot.lane.b32.xlu0 %v331, 64
        %v695 = vpop.permute.xlu0 %694
        %696 = vrot.lane.b32.xlu0 %v511, 64
        %v697 = vpop.permute.xlu0 %696
        %698 = vrot.lane.b32.xlu0 %v513, 64
        %v699 = vpop.permute.xlu0 %698
        %700 = vrot.lane.b32.xlu0 %v515, 64
        %v701 = vpop.permute.xlu0 %700
        %v704 = vunpack.c.l.s4 1983009808
        %v705 = vunpack.c.0.s8 %v704
        %v706 = vlaneseq
        %v707 = vshrl.u32 %v706, 7
        %v708 = vsub.s32 %v705, %v707
        %v709 = vrot.slane %v695, %v708
        %v712 = vunpack.c.l.s4 1983009808
        %v713 = vunpack.c.0.s8 %v712
        %v714 = vlaneseq
        %v715 = vshrl.u32 %v714, 7
        %v716 = vsub.s32 %v713, %v715
        %v717 = vrot.slane %v699, %v716
        %v718 = vcombine.low %v709, %v717
        %v719 = vcombine.high %v709, %v717
        %v721 = vunpack.c.l.s4 1934713408
        %v722 = vunpack.c.0.s8 %v721
        %v723 = vlaneseq
        %v724 = vshrl.u32 %v723, 7
        %v725 = vsub.s32 %v722, %v724
        %v726 = vrot.slane %v718, %v725
        %v728 = vunpack.c.l.s4 1934713408
        %v729 = vunpack.c.0.s8 %v728
        %v730 = vlaneseq
        %v731 = vshrl.u32 %v730, 7
        %v732 = vsub.s32 %v729, %v731
        %v733 = vrot.slane %v719, %v732
        %v734 = vcombine.high %v726, 0
        %v735 = vcombine.high %v733, 0
        %v738 = vunpack.c.l.s4 1983009808
        %v739 = vunpack.c.0.s8 %v738
        %v740 = vlaneseq
        %v741 = vshrl.u32 %v740, 7
        %v742 = vsub.s32 %v739, %v741
        %v743 = vrot.slane %v697, %v742
        %v746 = vunpack.c.l.s4 1983009808
        %v747 = vunpack.c.0.s8 %v746
        %v748 = vlaneseq
        %v749 = vshrl.u32 %v748, 7
        %v750 = vsub.s32 %v747, %v749
        %v751 = vrot.slane %v701, %v750
        %v752 = vcombine.low %v743, %v751
        %v753 = vcombine.high %v743, %v751
        %v755 = vunpack.c.l.s4 1934713408
        %v756 = vunpack.c.0.s8 %v755
        %v757 = vlaneseq
        %v758 = vshrl.u32 %v757, 7
        %v759 = vsub.s32 %v756, %v758
        %v760 = vrot.slane %v752, %v759
        %v762 = vunpack.c.l.s4 1934713408
        %v763 = vunpack.c.0.s8 %v762
        %v764 = vlaneseq
        %v765 = vshrl.u32 %v764, 7
        %v766 = vsub.s32 %v763, %v765
        %v767 = vrot.slane %v753, %v766
        %v768 = vcombine.high %v760, 0
        %v769 = vcombine.high %v767, 0
        %v772 = vpack.i.b16 %v760, %v726
        %v774 = vshrl.u32 %v726, 16
        %v775 = vshrl.u32 %v760, 16
        %v776 = vpack.i.b16 %v775, %v774
        %v780 = vpack.i.b16 %v768, %v734
        %v782 = vshrl.u32 %v734, 16
        %v783 = vshrl.u32 %v768, 16
        %v784 = vpack.i.b16 %v783, %v782
        %v788 = vpack.i.b16 %v767, %v733
        %v790 = vshrl.u32 %v733, 16
        %v791 = vshrl.u32 %v767, 16
        %v792 = vpack.i.b16 %v791, %v790
        %v796 = vpack.i.b16 %v769, %v735
        %v798 = vshrl.u32 %v735, 16
        %v799 = vshrl.u32 %v769, 16
        %v800 = vpack.i.b16 %v799, %v798
        %v802 = vcombine.low %v772, %v788
        %v804 = vunpack.c.l.s4 1983009808
        %v805 = vunpack.c.0.s8 %v804
        %v806 = vlaneseq
        %v807 = vshrl.u32 %v806, 7
        %v808 = vsub.s32 %v805, %v807
        %v809 = vrot.slane %v802, %v808
        %v810 = vcombine.low %v780, %v796
        %v812 = vunpack.c.l.s4 1983009808
        %v813 = vunpack.c.0.s8 %v812
        %v814 = vlaneseq
        %v815 = vshrl.u32 %v814, 7
        %v816 = vsub.s32 %v813, %v815
        %v817 = vrot.slane %v810, %v816
        %v818 = vcombine.low %v809, %v817
        %v820 = vunpack.c.l.s4 1934713408
        %v821 = vunpack.c.0.s8 %v820
        %v822 = vlaneseq
        %v823 = vshrl.u32 %v822, 7
        %v824 = vsub.s32 %v821, %v823
        %v825 = vrot.slane %v818, %v824
        %v826 = vcombine.high %v825, 0
        %v827 = vcombine.low %v776, %v792
        %v829 = vunpack.c.l.s4 1983009808
        %v830 = vunpack.c.0.s8 %v829
        %v831 = vlaneseq
        %v832 = vshrl.u32 %v831, 7
        %v833 = vsub.s32 %v830, %v832
        %v834 = vrot.slane %v827, %v833
        %v835 = vcombine.low %v784, %v800
        %v837 = vunpack.c.l.s4 1983009808
        %v838 = vunpack.c.0.s8 %v837
        %v839 = vlaneseq
        %v840 = vshrl.u32 %v839, 7
        %v841 = vsub.s32 %v838, %v840
        %v842 = vrot.slane %v835, %v841
        %v843 = vcombine.low %v834, %v842
        %v845 = vunpack.c.l.s4 1934713408
        %v846 = vunpack.c.0.s8 %v845
        %v847 = vlaneseq
        %v848 = vshrl.u32 %v847, 7
        %v849 = vsub.s32 %v846, %v848
        %v850 = vrot.slane %v843, %v849
        %v851 = vcombine.high %v850, 0
        %v854 = vpack.i.b16 %v850, %v825
        %v856 = vshrl.u32 %v825, 16
        %v857 = vshrl.u32 %v850, 16
        %v858 = vpack.i.b16 %v857, %v856
        %v862 = vpack.i.b16 %v851, %v826
        %v864 = vshrl.u32 %v826, 16
        %v865 = vshrl.u32 %v851, 16
        %v866 = vpack.i.b16 %v865, %v864
        %868 = vst.msk [vmem:[%s266] sm:$0xf] %vm504, %v854
        %869 = vst.msk [vmem:[%s266 + $0x4] sm:$0xf] %vm504, %v858
        %870 = vst.msk [vmem:[%s266 + $0x8] sm:$0xf] %vm504, %v862
        %871 = vst.msk [vmem:[%s266 + $0xc] sm:$0xf] %vm504, %v866
        %s872 = sand.u32 %s97, 1
        %s873 = scalar_lea.sflag [#allocation4], %s872
        %s874 = sand.u32 %s97, 1
        %s875 = smul.addr %s874, 16
        %s876 = scalar_lea.vmem [#allocation7], %s875
        %s877 = sand.u32 %s26, 1
        %s878 = scalar_lea.sflag [#allocation9], %s877
        %s879 = sand.u32 %s125, 1
        %s880 = smul.addr %s879, 16
        %s881 = scalar_lea.vmem [#allocation8], %s880
        %s882 = sand.u32 %s26, 1
        %s883 = scalar_lea.sflag [#allocation9], %s882
        %s884 = sand.u32 %s153, 1
        %s885 = smul.addr %s884, 16
        %s886 = scalar_lea.vmem [#allocation10], %s885
        // Predicated region
        $region37: #{tpu_custom_call.1} parent=27 // pred_check
          %p887 = pneg %p107
        $region38: #{tpu_custom_call.1} parent=27 // pred_check_branch
          %889 = sbr.rel (%p887) target = $region40
        $region39: #{tpu_custom_call.1} parent=27 // pred_region
          %s891 = ssub.s32 256, 256
          %892 = vsyncadd %s873, %s891
          %s893 = smul.addr %s30, 4
          %s894 = sadd.s32 %s31, %s893
          %s895 = smul.addr %s894, 64
          %s896 = scalar_lea.hbm %s2, %s895
          %s897 = sshll.u32 %s876, 4
          %s898 = int_to_ptr.vmem [resolvable:$true] %s897
          %903 = dma.vmem_to_hbm [thread:$0]  %s898, 256, %s896, %s873, 64, 64, 4
        $region40: #{tpu_custom_call.1} parent=27 // pred_fallthru
          _
        // Predicated region
        $region41: #{tpu_custom_call.1} parent=27 // pred_check
          %p904 = pneg %p135
        $region42: #{tpu_custom_call.1} parent=27 // pred_check_branch
          %906 = sbr.rel (%p904) target = $region44
        $region43: #{tpu_custom_call.1} parent=27 // pred_region
          %s908 = ssub.s32 256, 256
          %909 = vsyncadd %s878, %s908
          %s910 = smul.addr %s30, 4
          %s911 = sadd.s32 %s31, %s910
          %s912 = smul.addr %s911, 64
          %s913 = scalar_lea.hbm %s3, %s912
          %s914 = sshll.u32 %s881, 4
          %s915 = int_to_ptr.vmem [resolvable:$true] %s914
          %920 = dma.vmem_to_hbm [thread:$0]  %s915, 256, %s913, %s878, 64, 64, 4
        $region44: #{tpu_custom_call.1} parent=27 // pred_fallthru
          _
        // Predicated region
        $region45: #{tpu_custom_call.1} parent=27 // pred_check
          %p921 = pneg %p163
        $region46: #{tpu_custom_call.1} parent=27 // pred_check_branch
          %923 = sbr.rel (%p921) target = $region48
        $region47: #{tpu_custom_call.1} parent=27 // pred_region
          %s925 = ssub.s32 256, 256
          %926 = vsyncadd %s883, %s925
          %s927 = smul.addr %s30, 4
          %s928 = sadd.s32 %s31, %s927
          %s929 = smul.addr %s928, 64
          %s930 = scalar_lea.hbm %s4, %s929
          %s931 = sshll.u32 %s886, 4
          %s932 = int_to_ptr.vmem [resolvable:$true] %s931
          %937 = dma.vmem_to_hbm [thread:$0]  %s932, 256, %s930, %s883, 64, 64, 4
        $region48: #{tpu_custom_call.1} parent=27 // pred_fallthru
          _
      $region28: #{tpu_custom_call.1} parent=5 // pred_fallthru
        _
      %p938 = scmp.le.s32.totalorder 2, %s21
      // Predicated region
      $region49: #{tpu_custom_call.1} parent=5 // pred_check
        %p939 = pneg %p938
      $region50: #{tpu_custom_call.1} parent=5 // pred_check_branch
        %941 = sbr.rel (%p939) target = $region52
      $region51: #{tpu_custom_call.1} parent=5 // pred_region
        %s942 = ssub.s32 %s21, 2
        // Predicated region
        $region53: #{tpu_custom_call.1} parent=51 // pred_check
          %p943 = pneg %p113
        $region54: #{tpu_custom_call.1} parent=51 // pred_check_branch
          %945 = sbr.rel (%p943) target = $region56
        $region55: #{tpu_custom_call.1} parent=51 // pred_region
          %s946 = sand.u32 %s98, 1
          %s947 = scalar_lea.sflag [#allocation4], %s946
          %s948 = sand.u32 %s98, 1
          %s949 = smul.addr %s948, 16
          %s950 = scalar_lea.vmem [#allocation7], %s949
          %951 = dma.done %s947, 256
        $region56: #{tpu_custom_call.1} parent=51 // pred_fallthru
          _
        // Predicated region
        $region57: #{tpu_custom_call.1} parent=51 // pred_check
          %p952 = pneg %p141
        $region58: #{tpu_custom_call.1} parent=51 // pred_check_branch
          %954 = sbr.rel (%p952) target = $region60
        $region59: #{tpu_custom_call.1} parent=51 // pred_region
          %s955 = sand.u32 %s27, 1
          %s956 = scalar_lea.sflag [#allocation9], %s955
          %s957 = sand.u32 %s126, 1
          %s958 = smul.addr %s957, 16
          %s959 = scalar_lea.vmem [#allocation8], %s958
          %960 = dma.done %s956, 256
        $region60: #{tpu_custom_call.1} parent=51 // pred_fallthru
          _
        // Predicated region
        $region61: #{tpu_custom_call.1} parent=51 // pred_check
          %p961 = pneg %p169
        $region62: #{tpu_custom_call.1} parent=51 // pred_check_branch
          %963 = sbr.rel (%p961) target = $region64
        $region63: #{tpu_custom_call.1} parent=51 // pred_region
          %s964 = sand.u32 %s27, 1
          %s965 = scalar_lea.sflag [#allocation9], %s964
          %s966 = sand.u32 %s154, 1
          %s967 = smul.addr %s966, 16
          %s968 = scalar_lea.vmem [#allocation10], %s967
          %969 = dma.done %s965, 256
        $region64: #{tpu_custom_call.1} parent=51 // pred_fallthru
          _
      $region52: #{tpu_custom_call.1} parent=5 // pred_fallthru
        _
    $region6: #{tpu_custom_call.1} parent=1 // loop_footer
      %s25 = sadd.s32 1, %s21
    $region7: #{tpu_custom_call.1} parent=1 // loop_footer_branch
      %20 = sbr.rel target = $region3
    $region8: #{tpu_custom_call.1} parent=1 // loop_exit
      _
    %970 = vsyncpa [#allocation3], 1
    %s971 = scalar_lea.sflag [#allocation3], 1
    %972 = vsyncpa %s971, 1
    %973 = vsyncpa [#allocation6], 1
    %974 = vsyncpa [#allocation4], 1
    %s975 = scalar_lea.sflag [#allocation4], 1
    %976 = vsyncpa %s975, 1
    %977 = vsyncpa [#allocation9], 1
    %s978 = scalar_lea.sflag [#allocation9], 1
    %979 = vsyncpa %s978, 1

</llo_original>
